<compile_context>
chip_gen: v6e
topology: v6e:2x2x1
jax: 0.10.0
libtpu: 0.0.40
codegen_flags: <defaults>
</compile_context>

<pallas_src>
import functools

import jax
import jax.numpy as jnp
from jax.experimental import pallas as pl
from jax.experimental.pallas import tpu as pltpu


def _sigmoid(x):
    # sigmoid(x) == 0.5 * tanh(0.5 * x) + 0.5  -- a single EUP transcendental.
    return 0.5 * jnp.tanh(0.5 * x) + 0.5


def _mlp_kernel(x_ref, w1_ref, b1_ref, w2_ref, b2_ref, w3_ref, b3_ref, o_ref,
                *, tc):
    # x_ref : (tb, n)   f32   -- natural (batch-major) layout straight from HBM
    # w1_ref: (3n, n)   bf16,  b1_ref: (3n, 1) f32
    # w2_ref: (2n, 3n)  bf16,  b2_ref: (2n, 1) f32
    # w3_ref: (2n, 1)   f32,   b3_ref: (1, 1)  f32 (SMEM scalar)
    # o_ref : (1, tb)   f32   -- lane-dense output block (batch on lanes)
    tb = x_ref.shape[0]
    n_chunks = tb // tc

    # Weights/biases are tiny (<= ~12 KiB each); load once and keep them
    # resident across the batch sub-chunks.
    w1 = w1_ref[...]
    w2 = w2_ref[...]
    b1 = b1_ref[...]
    b2 = b2_ref[...]
    w3 = w3_ref[...]
    b3 = b3_ref[0, 0]

    # Static (unrolled) loop over tc-wide batch sub-chunks: bounds the per-
    # chunk f32 working set and keeps all slice offsets compile-time constants
    # (aligned, unmasked vector accesses).
    for c in range(n_chunks):
        # (tc, n) f32 -> transpose (XLU) -> bf16 (VPU): batch lands on lanes.
        xt = x_ref[pl.ds(c * tc, tc), :].T.astype(jnp.bfloat16)       # (n, tc)

        # Layer 1: (3n, n) @ (n, tc) -> (3n, tc), f32 accumulation on the MXU.
        h1 = jnp.dot(w1, xt, preferred_element_type=jnp.float32)
        h1 = _sigmoid(h1 + b1)                                        # f32 VPU/EUP

        # Layer 2: (2n, 3n) @ (3n, tc) -> (2n, tc).
        h2 = jnp.dot(w2, h1.astype(jnp.bfloat16),
                     preferred_element_type=jnp.float32)
        h2 = _sigmoid(h2 + b2)                                        # (2n, tc)

        # Layer 3 (out_features == 1): VPU multiply + sublane (XLU) reduction
        # instead of an N=1 MXU matmul; result is already lane-major (1, tc).
        logits = jnp.sum(h2 * w3, axis=0, keepdims=True) + b3
        o_ref[:, pl.ds(c * tc, tc)] = _sigmoid(logits).astype(o_ref.dtype)


@functools.partial(jax.jit, static_argnames=("tb", "tc"))
def song_classifier_forward(x, params, *, tb=2048, tc=512):
    """Fused forward pass of SongClassifierModel2.

    x: (B, n_inputs) float32.
    params: PyTorch-layout params: w{k}: (out, in), b{k}: (out,).
    Returns (B, 1) float32.
    """
    assert tb % 128 == 0 and tc % 128 == 0 and tb % tc == 0, (tb, tc)
    B, n = x.shape
    w1, b1 = params["w1"], params["b1"]   # (3n, n),  (3n,)
    w2, b2 = params["w2"], params["b2"]   # (2n, 3n), (2n,)
    w3, b3 = params["w3"], params["b3"]   # (1, 2n),  (1,)

    # Tiny batches (< one 128-lane tile): pad the few missing rows (cheap).
    if B < 128:
        x = jnp.pad(x, ((0, 128 - B), (0, 0)))
    rows = x.shape[0]

    # Clamp tile / sub-chunk sizes:
    #   * tc never exceeds the tile or the (128-aligned) batch,
    #   * tb never exceeds the batch (only the genuine last block is ragged),
    #   * for larger batches prefer >= 4 grid steps (v7x: 2 TCs x >= 2 steps).
    tc = min(tc, tb, (rows // 128) * 128)
    tb = min(tb,
             max(tc, (rows // tc) * tc),
             max(tc, ((rows // 4) // tc) * tc))
    assert tb % tc == 0 and tb % 128 == 0, (tb, tc)

    nb = pl.cdiv(rows, tb)
    b_pad = nb * tb          # only the tiny (1, .) output row gets padded

    # Matmul operands in bf16 (MXU path); bias / elementwise stay f32.
    w1b = w1.astype(jnp.bfloat16)                    # (3n, n)
    w2b = w2.astype(jnp.bfloat16)                    # (2n, 3n)
    b1c = b1.reshape(-1, 1).astype(jnp.float32)      # (3n, 1)
    b2c = b2.reshape(-1, 1).astype(jnp.float32)      # (2n, 1)
    w3c = w3.reshape(-1, 1).astype(jnp.float32)      # (2n, 1) column, VPU path
    b3c = b3.reshape(1, 1).astype(jnp.float32)       # (1, 1) scalar -> SMEM

    const = lambda a: pl.BlockSpec(a.shape, lambda i: (0,) * a.ndim)

    out = pl.pallas_call(
        functools.partial(_mlp_kernel, tc=tc),
        out_shape=jax.ShapeDtypeStruct((1, b_pad), jnp.float32),
        grid=(nb,),
        in_specs=[
            pl.BlockSpec((tb, n), lambda i: (i, 0)),     # X tile, natural layout
            const(w1b), const(b1c),                      # resident weights/biases
            const(w2b), const(b2c),
            const(w3c),
            pl.BlockSpec(memory_space=pltpu.MemorySpace.SMEM),   # b3 scalar
        ],
        out_specs=pl.BlockSpec((1, tb), lambda i: (0, i)),       # lane-dense
        compiler_params=pltpu.CompilerParams(
            dimension_semantics=("parallel",),           # megacore on v7x
            vmem_limit_bytes=32 * 1024 * 1024,
        ),
    )(x, w1b, b1c, w2b, b2c, w3c, b3c)

    return out[0, :B].reshape(B, 1)


def init_params(key, n_inputs):
    """torch.nn.Linear-style init (U(-1/sqrt(fan_in))), PyTorch (out, in) layout."""
    dims = [(n_inputs, 3 * n_inputs), (3 * n_inputs, 2 * n_inputs), (2 * n_inputs, 1)]
    params = {}
    keys = jax.random.split(key, 2 * len(dims))
    for i, (fin, fout) in enumerate(dims):
        bound = 1.0 / (fin ** 0.5)
        params[f"w{i + 1}"] = jax.random.uniform(
            keys[2 * i], (fout, fin), jnp.float32, -bound, bound)
        params[f"b{i + 1}"] = jax.random.uniform(
            keys[2 * i + 1], (fout,), jnp.float32, -bound, bound)
    return params


def reference_forward(x, p):
    h = jax.nn.sigmoid(x @ p["w1"].T + p["b1"])
    h = jax.nn.sigmoid(h @ p["w2"].T + p["b2"])
    return jax.nn.sigmoid(h @ p["w3"].T + p["b3"])


if __name__ == "__main__":
    key = jax.random.PRNGKey(0)
    k_param, k_x, k_xl = jax.random.split(key, 3)

    n_inputs = 32
    params = init_params(k_param, n_inputs)

    # Small batch, explicit small tile: 2 grid steps + ragged last X block.
    batch = 200
    x = jax.random.normal(k_x, (batch, n_inputs), jnp.float32)
    ref = reference_forward(x, params)
    out = jax.block_until_ready(song_classifier_forward(x, params, tb=128, tc=128))
    assert out.shape == (batch, 1), out.shape
    err = float(jnp.max(jnp.abs(out - ref)))
    assert jnp.allclose(out, ref, atol=2e-2, rtol=2e-2), err

    # Same batch with the default (auto-clamped) tile sizes.
    out2 = jax.block_until_ready(song_classifier_forward(x, params))
    err2 = float(jnp.max(jnp.abs(out2 - ref)))
    assert jnp.allclose(out2, ref, atol=2e-2, rtol=2e-2), err2

    # Larger batch: multiple grid steps, >1 inner sub-chunks, ragged last block.
    batch_l = 4296
    xl = jax.random.normal(k_xl, (batch_l, n_inputs), jnp.float32)
    refl = reference_forward(xl, params)
    outl = jax.block_until_ready(song_classifier_forward(xl, params))
    errl = float(jnp.max(jnp.abs(outl - refl)))
    assert outl.shape == (batch_l, 1), outl.shape
    assert jnp.allclose(outl, refl, atol=2e-2, rtol=2e-2), errl

    # Tiny batch (< 128 rows): exercises the pad branch.
    x_tiny = x[:5]
    out_tiny = jax.block_until_ready(song_classifier_forward(x_tiny, params))
    assert out_tiny.shape == (5, 1), out_tiny.shape
    assert jnp.allclose(out_tiny, ref[:5], atol=2e-2, rtol=2e-2)

    print("KERNEL_OK")
</pallas_src>

<mosaic_0001>
module attributes {stable_mosaic.version = 11 : i64} {
  func.func @_mlp_kernel(%arg0: i32, %arg1: memref<128x32xf32, #tpu.memory_space<vmem>>, %arg2: memref<96x32xbf16, #tpu.memory_space<vmem>>, %arg3: memref<96x1xf32, #tpu.memory_space<vmem>>, %arg4: memref<64x96xbf16, #tpu.memory_space<vmem>>, %arg5: memref<64x1xf32, #tpu.memory_space<vmem>>, %arg6: memref<64x1xf32, #tpu.memory_space<vmem>>, %arg7: memref<1x1xf32, #tpu.memory_space<smem>>, %arg8: memref<1x128xf32, #tpu.memory_space<vmem>>) attributes {dimension_semantics = [#tpu.dimension_semantics<parallel>], iteration_bounds = array<i64: 2>, scalar_prefetch = 0 : i64, scratch_operands = 0 : i64, tpu.core_type = #tpu.core_type<tc>, window_params = [{transform_indices = @transform_0, window_bounds = array<i64: 128, 32>}, {pipeline_mode = #tpu.pipeline_mode<synchronous>, transform_indices = @transform_1, window_bounds = array<i64: 96, 32>}, {pipeline_mode = #tpu.pipeline_mode<synchronous>, transform_indices = @transform_2, window_bounds = array<i64: 96, 1>}, {pipeline_mode = #tpu.pipeline_mode<synchronous>, transform_indices = @transform_3, window_bounds = array<i64: 64, 96>}, {pipeline_mode = #tpu.pipeline_mode<synchronous>, transform_indices = @transform_4, window_bounds = array<i64: 64, 1>}, {pipeline_mode = #tpu.pipeline_mode<synchronous>, transform_indices = @transform_5, window_bounds = array<i64: 64, 1>}, {transform_indices = @transform_6, window_bounds = array<i64: 1, 1>}, {transform_indices = @transform_7, window_bounds = array<i64: 1, 128>}]} {
    %c0 = arith.constant 0 : index
    %c0_0 = arith.constant 0 : index
    %0 = vector.load %arg2[%c0, %c0_0] : memref<96x32xbf16, #tpu.memory_space<vmem>>, vector<96x32xbf16>
    %c0_1 = arith.constant 0 : index
    %c0_2 = arith.constant 0 : index
    %1 = vector.load %arg4[%c0_1, %c0_2] : memref<64x96xbf16, #tpu.memory_space<vmem>>, vector<64x96xbf16>
    %c0_3 = arith.constant 0 : index
    %c0_4 = arith.constant 0 : index
    %2 = vector.load %arg3[%c0_3, %c0_4] : memref<96x1xf32, #tpu.memory_space<vmem>>, vector<96x1xf32>
    %c0_5 = arith.constant 0 : index
    %c0_6 = arith.constant 0 : index
    %3 = vector.load %arg5[%c0_5, %c0_6] : memref<64x1xf32, #tpu.memory_space<vmem>>, vector<64x1xf32>
    %c0_7 = arith.constant 0 : index
    %c0_8 = arith.constant 0 : index
    %4 = vector.load %arg6[%c0_7, %c0_8] : memref<64x1xf32, #tpu.memory_space<vmem>>, vector<64x1xf32>
    %c0_9 = arith.constant 0 : index
    %c0_10 = arith.constant 0 : index
    %5 = memref.load %arg7[%c0_9, %c0_10] : memref<1x1xf32, #tpu.memory_space<smem>>
    %c0_11 = arith.constant 0 : index
    %c0_12 = arith.constant 0 : index
    %6 = vector.load %arg1[%c0_11, %c0_12] : memref<128x32xf32, #tpu.memory_space<vmem>>, vector<128x32xf32>
    %7 = tpu.transpose %6, [1, 0] : vector<128x32xf32> -> vector<32x128xf32>
    %8 = arith.truncf %7 : vector<32x128xf32> to vector<32x128xbf16>
    %cst = arith.constant dense<0.000000e+00> : vector<96x128xf32>
    %9 = tpu.matmul %0, %8, %cst {dimension_numbers = #tpu.dot_dimension_numbers<[1], [0], [0], [1], [0, 0, 1, 1], [], []>} : vector<96x32xbf16>, vector<32x128xbf16>, vector<96x128xf32> -> vector<96x128xf32>
    %10 = vector.broadcast %2 : vector<96x1xf32> to vector<96x128xf32>
    %11 = arith.addf %9, %10 : vector<96x128xf32>
    %cst_13 = arith.constant 5.000000e-01 : f32
    %12 = vector.broadcast %cst_13 : f32 to vector<96x128xf32>
    %13 = arith.mulf %12, %11 : vector<96x128xf32>
    %14 = math.tanh %13 : vector<96x128xf32>
    %cst_14 = arith.constant 5.000000e-01 : f32
    %15 = vector.broadcast %cst_14 : f32 to vector<96x128xf32>
    %16 = arith.mulf %15, %14 : vector<96x128xf32>
    %cst_15 = arith.constant 5.000000e-01 : f32
    %17 = vector.broadcast %cst_15 : f32 to vector<96x128xf32>
    %18 = arith.addf %16, %17 : vector<96x128xf32>
    %19 = arith.truncf %18 : vector<96x128xf32> to vector<96x128xbf16>
    %cst_16 = arith.constant dense<0.000000e+00> : vector<64x128xf32>
    %20 = tpu.matmul %1, %19, %cst_16 {dimension_numbers = #tpu.dot_dimension_numbers<[1], [0], [0], [1], [0, 0, 1, 1], [], []>} : vector<64x96xbf16>, vector<96x128xbf16>, vector<64x128xf32> -> vector<64x128xf32>
    %21 = vector.broadcast %3 : vector<64x1xf32> to vector<64x128xf32>
    %22 = arith.addf %20, %21 : vector<64x128xf32>
    %cst_17 = arith.constant 5.000000e-01 : f32
    %23 = vector.broadcast %cst_17 : f32 to vector<64x128xf32>
    %24 = arith.mulf %23, %22 : vector<64x128xf32>
    %25 = math.tanh %24 : vector<64x128xf32>
    %cst_18 = arith.constant 5.000000e-01 : f32
    %26 = vector.broadcast %cst_18 : f32 to vector<64x128xf32>
    %27 = arith.mulf %26, %25 : vector<64x128xf32>
    %cst_19 = arith.constant 5.000000e-01 : f32
    %28 = vector.broadcast %cst_19 : f32 to vector<64x128xf32>
    %29 = arith.addf %27, %28 : vector<64x128xf32>
    %30 = vector.broadcast %4 : vector<64x1xf32> to vector<64x128xf32>
    %31 = arith.mulf %29, %30 : vector<64x128xf32>
    %cst_20 = arith.constant dense<0.000000e+00> : vector<128xf32>
    %32 = vector.multi_reduction <add>, %31, %cst_20 [0] : vector<64x128xf32> to vector<128xf32>
    %33 = vector.shape_cast %32 : vector<128xf32> to vector<1x128xf32>
    %34 = vector.broadcast %5 : f32 to vector<1x128xf32>
    %35 = arith.addf %33, %34 : vector<1x128xf32>
    %cst_21 = arith.constant 5.000000e-01 : f32
    %36 = vector.broadcast %cst_21 : f32 to vector<1x128xf32>
    %37 = arith.mulf %36, %35 : vector<1x128xf32>
    %38 = math.tanh %37 : vector<1x128xf32>
    %cst_22 = arith.constant 5.000000e-01 : f32
    %39 = vector.broadcast %cst_22 : f32 to vector<1x128xf32>
    %40 = arith.mulf %39, %38 : vector<1x128xf32>
    %cst_23 = arith.constant 5.000000e-01 : f32
    %41 = vector.broadcast %cst_23 : f32 to vector<1x128xf32>
    %42 = arith.addf %40, %41 : vector<1x128xf32>
    %c0_24 = arith.constant 0 : index
    %c0_25 = arith.constant 0 : index
    %43 = vector.load %arg8[%c0_24, %c0_25] : memref<1x128xf32, #tpu.memory_space<vmem>>, vector<1x128xf32>
    tpu.vector_store %arg8[%c0_24, %c0_25], %42 {strides = array<i32>} : memref<1x128xf32, #tpu.memory_space<vmem>>, vector<1x128xf32>,
    return
  }
  func.func @transform_0(%arg0: i32) -> (i32, i32) {
    %c0_i32 = arith.constant 0 : i32
    %c0_i32_0 = arith.constant 0 : i32
    return %arg0, %c0_i32 : i32, i32
  }
  func.func @transform_1(%arg0: i32) -> (i32, i32) {
    %c0_i32 = arith.constant 0 : i32
    %c0_i32_0 = arith.constant 0 : i32
    %c0_i32_1 = arith.constant 0 : i32
    return %c0_i32, %c0_i32_0 : i32, i32
  }
  func.func @transform_2(%arg0: i32) -> (i32, i32) {
    %c0_i32 = arith.constant 0 : i32
    %c0_i32_0 = arith.constant 0 : i32
    %c0_i32_1 = arith.constant 0 : i32
    return %c0_i32, %c0_i32_0 : i32, i32
  }
  func.func @transform_3(%arg0: i32) -> (i32, i32) {
    %c0_i32 = arith.constant 0 : i32
    %c0_i32_0 = arith.constant 0 : i32
    %c0_i32_1 = arith.constant 0 : i32
    return %c0_i32, %c0_i32_0 : i32, i32
  }
  func.func @transform_4(%arg0: i32) -> (i32, i32) {
    %c0_i32 = arith.constant 0 : i32
    %c0_i32_0 = arith.constant 0 : i32
    %c0_i32_1 = arith.constant 0 : i32
    return %c0_i32, %c0_i32_0 : i32, i32
  }
  func.func @transform_5(%arg0: i32) -> (i32, i32) {
    %c0_i32 = arith.constant 0 : i32
    %c0_i32_0 = arith.constant 0 : i32
    %c0_i32_1 = arith.constant 0 : i32
    return %c0_i32, %c0_i32_0 : i32, i32
  }
  func.func @transform_6(%arg0: i32) -> (i32, i32) {
    %c0_i32 = arith.constant 0 : i32
    %c0_i32_0 = arith.constant 0 : i32
    %c0_i32_1 = arith.constant 0 : i32
    return %c0_i32, %c0_i32_0 : i32, i32
  }
  func.func @transform_7(%arg0: i32) -> (i32, i32) {
    %c0_i32 = arith.constant 0 : i32
    %c0_i32_0 = arith.constant 0 : i32
    return %c0_i32, %arg0 : i32, i32
  }
}

</mosaic_0001>

<llo_original>
// kernel: song_classifier_forward.1
$region0: #{song_classifier_forward.1}
  #allocation0 [shape = 'u32[]', space=smem, size = 0x4, offset = 0x4, fixed_abs, tag = 'smem constant byte address 0x4 - core index']
  #allocation1 [shape = 'u32[144,128]{1,0:T(1,128)}', space=vmem, size = 0x12000, scoped, tag = 'internal scratch']
  #allocation2 [shape = 'f32[1,1]{1,0:T(1,128)S(6)}', space=smem, size = 0x200, scoped, tag = 'scoped memory for song_classifier_forward.1']
  %s0 = inlined_call_operand.vmem [shape: f32[200,32], index: 0, kind: input, shape index: {}]
  %s1 = inlined_call_operand.vmem [shape: bf16[96,32], index: 1, kind: input, shape index: {}]
  %s2 = inlined_call_operand.vmem [shape: f32[96,1], index: 2, kind: input, shape index: {}]
  %s3 = inlined_call_operand.vmem [shape: bf16[64,96], index: 3, kind: input, shape index: {}]
  %s4 = inlined_call_operand.vmem [shape: f32[64,1], index: 4, kind: input, shape index: {}]
  %s5 = inlined_call_operand.vmem [shape: f32[64,1], index: 5, kind: input, shape index: {}]
  %s6 = inlined_call_operand.<no memory space> [shape: f32[1,1], index: 6, kind: input, shape index: {}]
  %s7 = inlined_call_operand.vmem [shape: f32[1,256], index: 7, kind: output, shape index: {}]
  %s8 = sld [smem:[#allocation0]]
  $region61: #{song_classifier_forward.1} parent=0
    _
  %s10 = ssub.s32 1, %s8
  %s11 = scalar_select 0, %s10, %s8
  %12 = sst [smem:[#allocation2]] %s6
  loop: start=0, step=1, limit=4
  $region2: #{song_classifier_forward.1} parent=0 // loop_pre_header
    _
  $region3: #{song_classifier_forward.1} parent=0 // loop_header
    %s14 = sphi 0, %s18
    %p15 = scmp.ge.s32.totalorder %s14, 4
    %s24 = sphi 0, %s26
    %s27 = sphi 0, %s24
    %s28 = sphi 0, %s27
    %s44 = sphi 0, %s28
    %s48 = sphi 0, %s48
    %s50 = sphi 0, %s48
    %s51 = sphi 0, %s50
    %s65 = sphi 0, %s51
    %s69 = sphi 0, %s69
    %s71 = sphi 0, %s69
    %s72 = sphi 0, %s71
    %s86 = sphi 0, %s72
    %s90 = sphi 0, %s90
    %s92 = sphi 0, %s90
    %s93 = sphi 0, %s92
    %s107 = sphi 0, %s93
    %s111 = sphi 0, %s111
    %s113 = sphi 0, %s111
    %s114 = sphi 0, %s113
    %s128 = sphi 0, %s114
    %s132 = sphi 0, %s132
    %s134 = sphi 0, %s132
    %s135 = sphi 0, %s134
    %s149 = sphi 0, %s135
    %s153 = sphi 0, %s153
    %s155 = sphi 0, %s153
    %s156 = sphi 0, %s155
    %s170 = sphi 0, %s156
    %s176 = sphi 0, %s178
    %s179 = sphi 0, %s176
    %s180 = sphi 0, %s179
    %s196 = sphi 0, %s180
  $region4: #{song_classifier_forward.1} parent=0 // loop_header_branch
    %17 = sbr.rel (%p15) target = $region8
  $region5: #{song_classifier_forward.1} parent=0 // loop_body
    %s19 = ssub.s32 %s14, 1
    %s20 = ssub.s32 %s14, 2
    %s21 = sadd.s32 %s14, 1
    %s22 = ssub.s32 %s14, %s21
    %p23 = scmp.eq.s32.totalorder %s22, 0
    %s25 = sadd.s32 %s24, 1
    %s26 = scalar_select %p23, %s24, %s25
    %p29 = pneg %p23
    %p30 = scmp.eq.s32.totalorder %s14, 1
    %p31 = por %p29, %p30
    %p32 = scmp.ne.s32.totalorder %s24, %s27
    %p33 = scmp.eq.s32.totalorder %s14, 0
    %p34 = por %p32, %p33
    %p35 = scmp.ne.s32.totalorder %s24, %s27
    %p36 = scmp.eq.s32.totalorder %s19, 1
    %p37 = por %p35, %p36
    %p38 = scmp.ne.s32.totalorder %s27, %s28
    %p39 = scmp.eq.s32.totalorder %s19, 0
    %p40 = por %p38, %p39
    %p41 = scmp.ne.s32.totalorder %s27, %s28
    %p42 = scmp.eq.s32.totalorder %s20, 1
    %p43 = por %p41, %p42
    %p45 = scmp.ne.s32.totalorder %s28, %s44
    %p46 = scmp.eq.s32.totalorder %s20, 0
    %p47 = por %p45, %p46
    %s49 = sadd.s32 %s48, 1
    %p52 = scmp.eq.s32.totalorder %s14, 1
    %p53 = scmp.ne.s32.totalorder %s48, %s50
    %p54 = scmp.eq.s32.totalorder %s14, 0
    %p55 = por %p53, %p54
    %p56 = scmp.ne.s32.totalorder %s48, %s50
    %p57 = scmp.eq.s32.totalorder %s19, 1
    %p58 = por %p56, %p57
    %p59 = scmp.ne.s32.totalorder %s50, %s51
    %p60 = scmp.eq.s32.totalorder %s19, 0
    %p61 = por %p59, %p60
    %p62 = scmp.ne.s32.totalorder %s50, %s51
    %p63 = scmp.eq.s32.totalorder %s20, 1
    %p64 = por %p62, %p63
    %p66 = scmp.ne.s32.totalorder %s51, %s65
    %p67 = scmp.eq.s32.totalorder %s20, 0
    %p68 = por %p66, %p67
    %s70 = sadd.s32 %s69, 1
    %p73 = scmp.eq.s32.totalorder %s14, 1
    %p74 = scmp.ne.s32.totalorder %s69, %s71
    %p75 = scmp.eq.s32.totalorder %s14, 0
    %p76 = por %p74, %p75
    %p77 = scmp.ne.s32.totalorder %s69, %s71
    %p78 = scmp.eq.s32.totalorder %s19, 1
    %p79 = por %p77, %p78
    %p80 = scmp.ne.s32.totalorder %s71, %s72
    %p81 = scmp.eq.s32.totalorder %s19, 0
    %p82 = por %p80, %p81
    %p83 = scmp.ne.s32.totalorder %s71, %s72
    %p84 = scmp.eq.s32.totalorder %s20, 1
    %p85 = por %p83, %p84
    %p87 = scmp.ne.s32.totalorder %s72, %s86
    %p88 = scmp.eq.s32.totalorder %s20, 0
    %p89 = por %p87, %p88
    %s91 = sadd.s32 %s90, 1
    %p94 = scmp.eq.s32.totalorder %s14, 1
    %p95 = scmp.ne.s32.totalorder %s90, %s92
    %p96 = scmp.eq.s32.totalorder %s14, 0
    %p97 = por %p95, %p96
    %p98 = scmp.ne.s32.totalorder %s90, %s92
    %p99 = scmp.eq.s32.totalorder %s19, 1
    %p100 = por %p98, %p99
    %p101 = scmp.ne.s32.totalorder %s92, %s93
    %p102 = scmp.eq.s32.totalorder %s19, 0
    %p103 = por %p101, %p102
    %p104 = scmp.ne.s32.totalorder %s92, %s93
    %p105 = scmp.eq.s32.totalorder %s20, 1
    %p106 = por %p104, %p105
    %p108 = scmp.ne.s32.totalorder %s93, %s107
    %p109 = scmp.eq.s32.totalorder %s20, 0
    %p110 = por %p108, %p109
    %s112 = sadd.s32 %s111, 1
    %p115 = scmp.eq.s32.totalorder %s14, 1
    %p116 = scmp.ne.s32.totalorder %s111, %s113
    %p117 = scmp.eq.s32.totalorder %s14, 0
    %p118 = por %p116, %p117
    %p119 = scmp.ne.s32.totalorder %s111, %s113
    %p120 = scmp.eq.s32.totalorder %s19, 1
    %p121 = por %p119, %p120
    %p122 = scmp.ne.s32.totalorder %s113, %s114
    %p123 = scmp.eq.s32.totalorder %s19, 0
    %p124 = por %p122, %p123
    %p125 = scmp.ne.s32.totalorder %s113, %s114
    %p126 = scmp.eq.s32.totalorder %s20, 1
    %p127 = por %p125, %p126
    %p129 = scmp.ne.s32.totalorder %s114, %s128
    %p130 = scmp.eq.s32.totalorder %s20, 0
    %p131 = por %p129, %p130
    %s133 = sadd.s32 %s132, 1
    %p136 = scmp.eq.s32.totalorder %s14, 1
    %p137 = scmp.ne.s32.totalorder %s132, %s134
    %p138 = scmp.eq.s32.totalorder %s14, 0
    %p139 = por %p137, %p138
    %p140 = scmp.ne.s32.totalorder %s132, %s134
    %p141 = scmp.eq.s32.totalorder %s19, 1
    %p142 = por %p140, %p141
    %p143 = scmp.ne.s32.totalorder %s134, %s135
    %p144 = scmp.eq.s32.totalorder %s19, 0
    %p145 = por %p143, %p144
    %p146 = scmp.ne.s32.totalorder %s134, %s135
    %p147 = scmp.eq.s32.totalorder %s20, 1
    %p148 = por %p146, %p147
    %p150 = scmp.ne.s32.totalorder %s135, %s149
    %p151 = scmp.eq.s32.totalorder %s20, 0
    %p152 = por %p150, %p151
    %s154 = sadd.s32 %s153, 1
    %p157 = scmp.eq.s32.totalorder %s14, 1
    %p158 = scmp.ne.s32.totalorder %s153, %s155
    %p159 = scmp.eq.s32.totalorder %s14, 0
    %p160 = por %p158, %p159
    %p161 = scmp.ne.s32.totalorder %s153, %s155
    %p162 = scmp.eq.s32.totalorder %s19, 1
    %p163 = por %p161, %p162
    %p164 = scmp.ne.s32.totalorder %s155, %s156
    %p165 = scmp.eq.s32.totalorder %s19, 0
    %p166 = por %p164, %p165
    %p167 = scmp.ne.s32.totalorder %s155, %s156
    %p168 = scmp.eq.s32.totalorder %s20, 1
    %p169 = por %p167, %p168
    %p171 = scmp.ne.s32.totalorder %s156, %s170
    %p172 = scmp.eq.s32.totalorder %s20, 0
    %p173 = por %p171, %p172
    %s174 = ssub.s32 %s14, %s21
    %p175 = scmp.eq.s32.totalorder %s174, 0
    %s177 = sadd.s32 %s176, 1
    %s178 = scalar_select %p175, %s176, %s177
    %p181 = pneg %p175
    %p182 = scmp.eq.s32.totalorder %s14, 1
    %p183 = por %p181, %p182
    %p184 = scmp.ne.s32.totalorder %s176, %s179
    %p185 = scmp.eq.s32.totalorder %s14, 0
    %p186 = por %p184, %p185
    %p187 = scmp.ne.s32.totalorder %s176, %s179
    %p188 = scmp.eq.s32.totalorder %s19, 1
    %p189 = por %p187, %p188
    %p190 = scmp.ne.s32.totalorder %s179, %s180
    %p191 = scmp.eq.s32.totalorder %s19, 0
    %p192 = por %p190, %p191
    %p193 = scmp.ne.s32.totalorder %s179, %s180
    %p194 = scmp.eq.s32.totalorder %s20, 1
    %p195 = por %p193, %p194
    %p197 = scmp.ne.s32.totalorder %s180, %s196
    %p198 = scmp.eq.s32.totalorder %s20, 0
    %p199 = por %p197, %p198
    %p200 = scmp.le.s32.totalorder 1, %s14
    %p201 = scmp.lt.s32.totalorder %s14, 3
    %p202 = pnand %p200, %p201
    %p203 = pneg %p202
    // Predicated region
    $region9: #{song_classifier_forward.1} parent=5 // pred_check
      _
    $region10: #{song_classifier_forward.1} parent=5 // pred_check_branch
      %205 = sbr.rel (%p202) target = $region12
    $region11: #{song_classifier_forward.1} parent=5 // pred_region
      %s206 = ssub.s32 %s14, 1
      // Predicated region
      $region13: #{song_classifier_forward.1} parent=11 // pred_check
        %p207 = pneg %p61
      $region14: #{song_classifier_forward.1} parent=11 // pred_check_branch
        %209 = sbr.rel (%p207) target = $region16
      $region15: #{song_classifier_forward.1} parent=11 // pred_region
        _
      $region16: #{song_classifier_forward.1} parent=11 // pred_fallthru
        _
      // Predicated region
      $region17: #{song_classifier_forward.1} parent=11 // pred_check
        %p210 = pneg %p82
      $region18: #{song_classifier_forward.1} parent=11 // pred_check_branch
        %212 = sbr.rel (%p210) target = $region20
      $region19: #{song_classifier_forward.1} parent=11 // pred_region
        _
      $region20: #{song_classifier_forward.1} parent=11 // pred_fallthru
        _
      // Predicated region
      $region21: #{song_classifier_forward.1} parent=11 // pred_check
        %p213 = pneg %p103
      $region22: #{song_classifier_forward.1} parent=11 // pred_check_branch
        %215 = sbr.rel (%p213) target = $region24
      $region23: #{song_classifier_forward.1} parent=11 // pred_region
        _
      $region24: #{song_classifier_forward.1} parent=11 // pred_fallthru
        _
      // Predicated region
      $region25: #{song_classifier_forward.1} parent=11 // pred_check
        %p216 = pneg %p124
      $region26: #{song_classifier_forward.1} parent=11 // pred_check_branch
        %218 = sbr.rel (%p216) target = $region28
      $region27: #{song_classifier_forward.1} parent=11 // pred_region
        _
      $region28: #{song_classifier_forward.1} parent=11 // pred_fallthru
        _
      // Predicated region
      $region29: #{song_classifier_forward.1} parent=11 // pred_check
        %p219 = pneg %p145
      $region30: #{song_classifier_forward.1} parent=11 // pred_check_branch
        %221 = sbr.rel (%p219) target = $region32
      $region31: #{song_classifier_forward.1} parent=11 // pred_region
        _
      $region32: #{song_classifier_forward.1} parent=11 // pred_fallthru
        _
      // Predicated region
      $region33: #{song_classifier_forward.1} parent=11 // pred_check
        %p222 = pneg %p166
      $region34: #{song_classifier_forward.1} parent=11 // pred_check_branch
        %224 = sbr.rel (%p222) target = $region36
      $region35: #{song_classifier_forward.1} parent=11 // pred_region
        _
      $region36: #{song_classifier_forward.1} parent=11 // pred_fallthru
        _
    $region12: #{song_classifier_forward.1} parent=5 // pred_fallthru
      _
    %p225 = scmp.lt.s32.totalorder %s14, 2
    // Predicated region
    $region37: #{song_classifier_forward.1} parent=5 // pred_check
      %p226 = pneg %p225
    $region38: #{song_classifier_forward.1} parent=5 // pred_check_branch
      %228 = sbr.rel (%p226) target = $region40
    $region39: #{song_classifier_forward.1} parent=5 // pred_region
      // Predicated region
      $region41: #{song_classifier_forward.1} parent=39 // pred_check
        %p229 = pneg %p34
      $region42: #{song_classifier_forward.1} parent=39 // pred_check_branch
        %231 = sbr.rel (%p229) target = $region44
      $region43: #{song_classifier_forward.1} parent=39 // pred_region
        %s232 = smul.u32 16, %s14
        %s233 = ssub.s32 25, %s232
        %p234 = scmp.lt.s32.totalorder %s233, 16
        %s235 = scalar_select %p234, %s233, 16
        %s236 = smul.u32 128, %s235
        %p237 = scmp.lt.s32.totalorder %s232, 24
        %s238 = scalar_select %p237, %s232, 24
        %s239 = smul.addr %s238, 8
        %s240 = scalar_lea.vmem %s0, %s239
        %s241 = smul.u32 16, %s14
        %s242 = ssub.s32 25, %s241
        %p243 = scmp.lt.s32.totalorder %s242, 16
        %s244 = scalar_select %p243, %s242, 16
        %s245 = smul.u32 128, %s244
      $region44: #{song_classifier_forward.1} parent=39 // pred_fallthru
        _
    $region40: #{song_classifier_forward.1} parent=5 // pred_fallthru
      _
    %p246 = scmp.le.s32.totalorder 1, %s14
    %p247 = scmp.lt.s32.totalorder %s14, 3
    %p248 = pnand %p246, %p247
    %p249 = pneg %p248
    // Predicated region
    $region45: #{song_classifier_forward.1} parent=5 // pred_check
      _
    $region46: #{song_classifier_forward.1} parent=5 // pred_check_branch
      %251 = sbr.rel (%p248) target = $region48
    $region47: #{song_classifier_forward.1} parent=5 // pred_region
      %s252 = ssub.s32 %s14, 1
      %s253 = smul.u32 16, %s19
      %s254 = ssub.s32 25, %s253
      %p255 = scmp.lt.s32.totalorder %s254, 16
      %s256 = scalar_select %p255, %s254, 16
      %s257 = smul.u32 128, %s256
      %p258 = scmp.lt.s32.totalorder %s253, 24
      %s259 = scalar_select %p258, %s253, 24
      %s260 = smul.addr %s259, 8
      %s261 = scalar_lea.vmem %s0, %s260
      %p262 = pneg %p40
      %p263 = pneg %p37
      %p264 = pneg %p61
      %p265 = pneg %p58
      %p266 = pneg %p82
      %p267 = pneg %p79
      %p268 = pneg %p103
      %p269 = pneg %p100
      %p270 = pneg %p124
      %p271 = pneg %p121
      %p272 = pneg %p145
      %p273 = pneg %p142
      %p274 = pneg %p166
      %p275 = pneg %p163
      %p276 = pneg %p192
      %p277 = pneg %p189
      %p278 = scmp.lt.s32.totalorder %s19, 1
      %s279 = scalar_select %p278, %s19, 1
      %s280 = scalar_lea.vmem %s7, %s279
      %s281 = smul.u32 16, %s19
      %s282 = ssub.s32 25, %s281
      %p283 = scmp.lt.s32.totalorder %s282, 16
      %s284 = scalar_select %p283, %s282, 16
      %s285 = smul.u32 128, %s284
      %p286 = scmp.lt.s32.totalorder %s281, 24
      %s287 = scalar_select %p286, %s281, 24
      %s288 = smul.addr %s287, 8
      %s289 = scalar_lea.vmem %s0, %s288
      %s290 = smul.u32 16, %s19
      %s291 = ssub.s32 25, %s290
      %p292 = scmp.lt.s32.totalorder %s291, 16
      %s293 = scalar_select %p292, %s291, 16
      %s294 = smul.u32 128, %s293
      %p295 = scmp.lt.s32.totalorder %s19, 1
      %s296 = scalar_select %p295, %s19, 1
      %s297 = scalar_lea.vmem %s7, %s296
      %v299 = vld [vmem:[%s1] sm:$0xf]
      %v300 = vld [vmem:[%s1 + $0x4] sm:$0xf]
      %v301 = vld [vmem:[%s1 + $0x8] sm:$0xf]
      %v302 = vld [vmem:[%s1 + $0xc] sm:$0xf]
      %v303 = vld [vmem:[%s1 + $0x10] sm:$0xf]
      %v304 = vld [vmem:[%s1 + $0x14] sm:$0xf]
      %v305 = vld [vmem:[%s1 + $0x18] sm:$0xf]
      %v306 = vld [vmem:[%s1 + $0x1c] sm:$0xf]
      %v307 = vld [vmem:[%s1 + $0x20] sm:$0xf]
      %v308 = vld [vmem:[%s1 + $0x24] sm:$0xf]
      %v309 = vld [vmem:[%s1 + $0x28] sm:$0xf]
      %v310 = vld [vmem:[%s1 + $0x2c] sm:$0xf]
      %v311 = vld [vmem:[%s3] sm:$0xf]
      %v312 = vld [vmem:[%s3 + $0x4] sm:$0xf]
      %v313 = vld [vmem:[%s3 + $0x8] sm:$0xf]
      %v314 = vld [vmem:[%s3 + $0xc] sm:$0xf]
      %v315 = vld [vmem:[%s3 + $0x10] sm:$0xf]
      %v316 = vld [vmem:[%s3 + $0x14] sm:$0xf]
      %v317 = vld [vmem:[%s3 + $0x18] sm:$0xf]
      %v318 = vld [vmem:[%s3 + $0x1c] sm:$0xf]
      %v319 = vld [vmem:[%s2] sm:$0xff]
      %v320 = vld [vmem:[%s2 + $0x8] sm:$0xff]
      %v321 = vld [vmem:[%s2 + $0x10] sm:$0xff]
      %v322 = vld [vmem:[%s2 + $0x18] sm:$0xff]
      %v323 = vld [vmem:[%s2 + $0x20] sm:$0xff]
      %v324 = vld [vmem:[%s2 + $0x28] sm:$0xff]
      %v325 = vld [vmem:[%s2 + $0x30] sm:$0xff]
      %v326 = vld [vmem:[%s2 + $0x38] sm:$0xff]
      %v327 = vld [vmem:[%s2 + $0x40] sm:$0xff]
      %v328 = vld [vmem:[%s2 + $0x48] sm:$0xff]
      %v329 = vld [vmem:[%s2 + $0x50] sm:$0xff]
      %v330 = vld [vmem:[%s2 + $0x58] sm:$0xff]
      %v331 = vld [vmem:[%s4] sm:$0xff]
      %v332 = vld [vmem:[%s4 + $0x8] sm:$0xff]
      %v333 = vld [vmem:[%s4 + $0x10] sm:$0xff]
      %v334 = vld [vmem:[%s4 + $0x18] sm:$0xff]
      %v335 = vld [vmem:[%s4 + $0x20] sm:$0xff]
      %v336 = vld [vmem:[%s4 + $0x28] sm:$0xff]
      %v337 = vld [vmem:[%s4 + $0x30] sm:$0xff]
      %v338 = vld [vmem:[%s4 + $0x38] sm:$0xff]
      %v339 = vld [vmem:[%s5] sm:$0xff]
      %v340 = vld [vmem:[%s5 + $0x8] sm:$0xff]
      %v341 = vld [vmem:[%s5 + $0x10] sm:$0xff]
      %v342 = vld [vmem:[%s5 + $0x18] sm:$0xff]
      %v343 = vld [vmem:[%s5 + $0x20] sm:$0xff]
      %v344 = vld [vmem:[%s5 + $0x28] sm:$0xff]
      %v345 = vld [vmem:[%s5 + $0x30] sm:$0xff]
      %v346 = vld [vmem:[%s5 + $0x38] sm:$0xff]
      %s347 = sld [smem:[#allocation2]]
      %v348 = vld [vmem:[%s289] sm:$0xff]
      %v349 = vld [vmem:[%s289 + $0x8] sm:$0xff]
      %v350 = vld [vmem:[%s289 + $0x10] sm:$0xff]
      %v351 = vld [vmem:[%s289 + $0x18] sm:$0xff]
      %v352 = vld [vmem:[%s289 + $0x20] sm:$0xff]
      %v353 = vld [vmem:[%s289 + $0x28] sm:$0xff]
      %v354 = vld [vmem:[%s289 + $0x30] sm:$0xff]
      %v355 = vld [vmem:[%s289 + $0x38] sm:$0xff]
      %v356 = vld [vmem:[%s289 + $0x40] sm:$0xff]
      %v357 = vld [vmem:[%s289 + $0x48] sm:$0xff]
      %v358 = vld [vmem:[%s289 + $0x50] sm:$0xff]
      %v359 = vld [vmem:[%s289 + $0x58] sm:$0xff]
      %v360 = vld [vmem:[%s289 + $0x60] sm:$0xff]
      %v361 = vld [vmem:[%s289 + $0x68] sm:$0xff]
      %v362 = vld [vmem:[%s289 + $0x70] sm:$0xff]
      %v363 = vld [vmem:[%s289 + $0x78] sm:$0xff]
      %364 = vxpose.xlu0.b32.start [1/16] %v348, 128
      %365 = vxpose.xlu0.b32.cont [2/16] %v349, 128
      %366 = vxpose.xlu0.b32.cont [3/16] %v350, 128
      %367 = vxpose.xlu0.b32.cont [4/16] %v351, 128
      %368 = vxpose.xlu0.b32.cont [5/16] %v352, 128
      %369 = vxpose.xlu0.b32.cont [6/16] %v353, 128
      %370 = vxpose.xlu0.b32.cont [7/16] %v354, 128
      %371 = vxpose.xlu0.b32.cont [8/16] %v355, 128
      %372 = vxpose.xlu0.b32.cont [9/16] %v356, 128
      %373 = vxpose.xlu0.b32.cont [10/16] %v357, 128
      %374 = vxpose.xlu0.b32.cont [11/16] %v358, 128
      %375 = vxpose.xlu0.b32.cont [12/16] %v359, 128
      %376 = vxpose.xlu0.b32.cont [13/16] %v360, 128
      %377 = vxpose.xlu0.b32.cont [14/16] %v361, 128
      %378 = vxpose.xlu0.b32.cont [15/16] %v362, 128
      %379 = vxpose.xlu0.b32.end [16/16] %v363, 128
      %v380 = vpop.trf.xlu0
      %v381 = vpop.trf.xlu0
      %v382 = vpop.trf.xlu0
      %v383 = vpop.trf.xlu0
      %v384 = vpop.trf.xlu0
      %v385 = vpop.trf.xlu0
      %v386 = vpop.trf.xlu0
      %v387 = vpop.trf.xlu0
      %v388 = vpop.trf.xlu0
      %v389 = vpop.trf.xlu0
      %v390 = vpop.trf.xlu0
      %v391 = vpop.trf.xlu0
      %v392 = vpop.trf.xlu0
      %v393 = vpop.trf.xlu0
      %v394 = vpop.trf.xlu0
      %v395 = vpop.trf.xlu0
      %v396 = vpack.c.bf16 %v381, %v380
      %v397 = vpack.c.bf16 %v383, %v382
      %399 = vset.pattern.permute.xlu0 0
      %400 = vperm.xlu0 %399, %v319
      %v401 = vpop.permute.xlu0 %400
      %404 = vset.pattern.permute.xlu0 0
      %405 = vperm.xlu0 %404, %v320
      %v406 = vpop.permute.xlu0 %405
      %409 = vset.pattern.permute.xlu0 0
      %410 = vperm.xlu0 %409, %v321
      %v411 = vpop.permute.xlu0 %410
      %414 = vset.pattern.permute.xlu0 0
      %415 = vperm.xlu0 %414, %v322
      %v416 = vpop.permute.xlu0 %415
      %419 = vset.pattern.permute.xlu0 0
      %420 = vperm.xlu0 %419, %v323
      %v421 = vpop.permute.xlu0 %420
      %424 = vset.pattern.permute.xlu0 0
      %425 = vperm.xlu0 %424, %v324
      %v426 = vpop.permute.xlu0 %425
      %429 = vset.pattern.permute.xlu0 0
      %430 = vperm.xlu0 %429, %v325
      %v431 = vpop.permute.xlu0 %430
      %434 = vset.pattern.permute.xlu0 0
      %435 = vperm.xlu0 %434, %v326
      %v436 = vpop.permute.xlu0 %435
      %439 = vset.pattern.permute.xlu0 0
      %440 = vperm.xlu0 %439, %v327
      %v441 = vpop.permute.xlu0 %440
      %444 = vset.pattern.permute.xlu0 0
      %445 = vperm.xlu0 %444, %v328
      %v446 = vpop.permute.xlu0 %445
      %449 = vset.pattern.permute.xlu0 0
      %450 = vperm.xlu0 %449, %v329
      %v451 = vpop.permute.xlu0 %450
      %454 = vset.pattern.permute.xlu0 0
      %455 = vperm.xlu0 %454, %v330
      %v456 = vpop.permute.xlu0 %455
      %v470 = vunpack.c.l.b16 %v299
      %v471 = vunpack.c.l.b16 %v300
      %v472 = vunpack.c.l.b16 %v301
      %v473 = vunpack.c.l.b16 %v302
      %v474 = vunpack.c.l.b16 %v303
      %v475 = vunpack.c.l.b16 %v304
      %v476 = vunpack.c.l.b16 %v305
      %v477 = vunpack.c.l.b16 %v306
      %v478 = vunpack.c.l.b16 %v307
      %v479 = vunpack.c.l.b16 %v308
      %v480 = vunpack.c.l.b16 %v309
      %v481 = vunpack.c.l.b16 %v310
      %v482 = vpack.c.b16 %v471, %v470
      %v483 = vpack.c.b16 %v473, %v472
      %v484 = vpack.c.b16 %v475, %v474
      %v485 = vpack.c.b16 %v477, %v476
      %v486 = vpack.c.b16 %v479, %v478
      %v487 = vpack.c.b16 %v481, %v480
      %vm488 = vcmask 261120
      %v490 = vsel %vm488, %v482, 0
      %v493 = vsel %vm488, %v483, 0
      %v496 = vsel %vm488, %v484, 0
      %v499 = vsel %vm488, %v485, 0
      %v502 = vsel %vm488, %v486, 0
      %v505 = vsel %vm488, %v487, 0
      %507 = vmatprep.subr.bf16.mxu0 0
      %508 = vmatpush1.bf16.msra.mxu0 0
      %509 = vmatprep.subr.bf16.mxu0 0
      %510 = vmatpush1.bf16.msra.mxu0 0
      %511 = vmatprep.subr.bf16.mxu0 0
      %512 = vmatpush1.bf16.msra.mxu0 0
      %513 = vmatprep.subr.bf16.mxu0 0
      %514 = vmatpush1.bf16.msra.mxu0 0
      %515 = vmatprep.subr.bf16.mxu0 0
      %516 = vmatpush1.bf16.msra.mxu0 0
      %517 = vmatprep.subr.bf16.mxu0 0
      %518 = vmatpush1.bf16.msra.mxu0 0
      %519 = vmatprep.subr.bf16.mxu0 0
      %520 = vmatpush1.bf16.msra.mxu0 %v397
      %521 = vmatprep.subr.bf16.mxu0 0
      %522 = vmatpush1.bf16.msra.mxu0 %v396
      %523 = vmatprep.subr.bf16.mxu0 0
      %524 = vmatpush2.bf16.msra.mxu0 0
      %525 = vmatprep.subr.bf16.mxu0 0
      %526 = vmatpush2.bf16.msra.mxu0 0
      %527 = vmatprep.subr.bf16.mxu0 0
      %528 = vmatpush2.bf16.msra.mxu0 0
      %529 = vmatprep.subr.bf16.mxu0 0
      %530 = vmatpush2.bf16.msra.mxu0 0
      %531 = vmatprep.subr.bf16.mxu0 0
      %532 = vmatpush2.bf16.msra.mxu0 0
      %533 = vmatprep.subr.bf16.mxu0 0
      %534 = vmatpush2.bf16.msra.mxu0 0
      %535 = vmatprep.subr.bf16.mxu0 0
      %536 = vmatpush2.bf16.msra.mxu0 0
      %537 = vmatprep.subr.bf16.mxu0 0
      %538 = vmatpush2.bf16.msra.mxu0 0
      %539 = vmatprep.mubr.bf16.mxu0 0
      %540 = vmatmul.mubr.bf16.gmra.mxu0 %v490
      %v541 = vpop.f32.mrf.mxu0
      %v542 = vadd.f32 %v401, %v541
      %v543 = vpop.f32.mrf.mxu0
      %v544 = vpop.f32.mrf.mxu0
      %v545 = vadd.f32 %v406, %v544
      %v546 = vpop.f32.mrf.mxu0
      %547 = vmatprep.mubr.bf16.mxu0 0
      %548 = vmatmul.mubr.bf16.gmra.mxu0 %v493
      %v549 = vpop.f32.mrf.mxu0
      %v550 = vadd.f32 %v411, %v549
      %v551 = vpop.f32.mrf.mxu0
      %v552 = vpop.f32.mrf.mxu0
      %v553 = vadd.f32 %v416, %v552
      %v554 = vpop.f32.mrf.mxu0
      %555 = vmatprep.mubr.bf16.mxu0 0
      %556 = vmatmul.mubr.bf16.gmra.mxu0 %v496
      %v557 = vpop.f32.mrf.mxu0
      %v558 = vadd.f32 %v421, %v557
      %v559 = vpop.f32.mrf.mxu0
      %v560 = vpop.f32.mrf.mxu0
      %v561 = vadd.f32 %v426, %v560
      %v562 = vpop.f32.mrf.mxu0
      %563 = vmatprep.mubr.bf16.mxu0 0
      %564 = vmatmul.mubr.bf16.gmra.mxu0 %v499
      %v565 = vpop.f32.mrf.mxu0
      %v566 = vadd.f32 %v431, %v565
      %v567 = vpop.f32.mrf.mxu0
      %v568 = vpop.f32.mrf.mxu0
      %v569 = vadd.f32 %v436, %v568
      %v570 = vpop.f32.mrf.mxu0
      %571 = vmatprep.mubr.bf16.mxu0 0
      %572 = vmatmul.mubr.bf16.gmra.mxu0 %v502
      %v573 = vpop.f32.mrf.mxu0
      %v574 = vadd.f32 %v441, %v573
      %v575 = vpop.f32.mrf.mxu0
      %v576 = vpop.f32.mrf.mxu0
      %v577 = vadd.f32 %v446, %v576
      %v578 = vpop.f32.mrf.mxu0
      %579 = vmatprep.mubr.bf16.mxu0 0
      %580 = vmatmul.mubr.bf16.gmra.mxu0 %v505
      %v581 = vpop.f32.mrf.mxu0
      %v582 = vadd.f32 %v451, %v581
      %v583 = vpop.f32.mrf.mxu0
      %v584 = vpop.f32.mrf.mxu0
      %v585 = vadd.f32 %v456, %v584
      %v586 = vpop.f32.mrf.mxu0
      %587 = vdwg.mxu0
      %v588 = vmul.f32 %v542, 0.5
      %v589 = vmul.f32 %v545, 0.5
      %v590 = vmul.f32 %v550, 0.5
      %v591 = vmul.f32 %v553, 0.5
      %v592 = vmul.f32 %v558, 0.5
      %v593 = vmul.f32 %v561, 0.5
      %v594 = vmul.f32 %v566, 0.5
      %v595 = vmul.f32 %v569, 0.5
      %v596 = vmul.f32 %v574, 0.5
      %v597 = vmul.f32 %v577, 0.5
      %v598 = vmul.f32 %v582, 0.5
      %v599 = vmul.f32 %v585, 0.5
      %v600 = vtanh.pop %v588
      %v601 = vtanh.pop %v589
      %v602 = vtanh.pop %v590
      %v603 = vtanh.pop %v591
      %v604 = vtanh.pop %v592
      %v605 = vtanh.pop %v593
      %v606 = vtanh.pop %v594
      %v607 = vtanh.pop %v595
      %v608 = vtanh.pop %v596
      %v609 = vtanh.pop %v597
      %v610 = vtanh.pop %v598
      %v611 = vtanh.pop %v599
      %v612 = vmul.f32 %v600, 0.5
      %v613 = vmul.f32 %v601, 0.5
      %v614 = vmul.f32 %v602, 0.5
      %v615 = vmul.f32 %v603, 0.5
      %v616 = vmul.f32 %v604, 0.5
      %v617 = vmul.f32 %v605, 0.5
      %v618 = vmul.f32 %v606, 0.5
      %v619 = vmul.f32 %v607, 0.5
      %v620 = vmul.f32 %v608, 0.5
      %v621 = vmul.f32 %v609, 0.5
      %v622 = vmul.f32 %v610, 0.5
      %v623 = vmul.f32 %v611, 0.5
      %v624 = vadd.f32 %v612, 0.5
      %v625 = vadd.f32 %v613, 0.5
      %v626 = vadd.f32 %v614, 0.5
      %v627 = vadd.f32 %v615, 0.5
      %v628 = vadd.f32 %v616, 0.5
      %v629 = vadd.f32 %v617, 0.5
      %v630 = vadd.f32 %v618, 0.5
      %v631 = vadd.f32 %v619, 0.5
      %v632 = vadd.f32 %v620, 0.5
      %v633 = vadd.f32 %v621, 0.5
      %v634 = vadd.f32 %v622, 0.5
      %v635 = vadd.f32 %v623, 0.5
      %v636 = vpack.c.bf16 %v625, %v624
      %v637 = vpack.c.bf16 %v627, %v626
      %v638 = vpack.c.bf16 %v629, %v628
      %v639 = vpack.c.bf16 %v631, %v630
      %v640 = vpack.c.bf16 %v633, %v632
      %v641 = vpack.c.bf16 %v635, %v634
      %643 = vset.pattern.permute.xlu0 0
      %644 = vperm.xlu0 %643, %v331
      %v645 = vpop.permute.xlu0 %644
      %648 = vset.pattern.permute.xlu0 0
      %649 = vperm.xlu0 %648, %v332
      %v650 = vpop.permute.xlu0 %649
      %653 = vset.pattern.permute.xlu0 0
      %654 = vperm.xlu0 %653, %v333
      %v655 = vpop.permute.xlu0 %654
      %658 = vset.pattern.permute.xlu0 0
      %659 = vperm.xlu0 %658, %v334
      %v660 = vpop.permute.xlu0 %659
      %663 = vset.pattern.permute.xlu0 0
      %664 = vperm.xlu0 %663, %v335
      %v665 = vpop.permute.xlu0 %664
      %668 = vset.pattern.permute.xlu0 0
      %669 = vperm.xlu0 %668, %v336
      %v670 = vpop.permute.xlu0 %669
      %673 = vset.pattern.permute.xlu0 0
      %674 = vperm.xlu0 %673, %v337
      %v675 = vpop.permute.xlu0 %674
      %678 = vset.pattern.permute.xlu0 0
      %679 = vperm.xlu0 %678, %v338
      %v680 = vpop.permute.xlu0 %679
      %v690 = vunpack.c.l.b16 %v311
      %v691 = vunpack.c.l.b16 %v312
      %v692 = vunpack.c.l.b16 %v313
      %v693 = vunpack.c.l.b16 %v314
      %v694 = vunpack.c.l.b16 %v315
      %v695 = vunpack.c.l.b16 %v316
      %v696 = vunpack.c.l.b16 %v317
      %v697 = vunpack.c.l.b16 %v318
      %v698 = vpack.c.b16 %v691, %v690
      %v699 = vpack.c.b16 %v693, %v692
      %v700 = vpack.c.b16 %v695, %v694
      %v701 = vpack.c.b16 %v697, %v696
      %vm702 = vcmask 785408
      %v704 = vsel %vm702, %v698, 0
      %v707 = vsel %vm702, %v699, 0
      %v710 = vsel %vm702, %v700, 0
      %v713 = vsel %vm702, %v701, 0
      %715 = vmatprep.subr.bf16.mxu0 0
      %716 = vmatpush1.bf16.msra.mxu0 0
      %717 = vmatprep.subr.bf16.mxu0 0
      %718 = vmatpush1.bf16.msra.mxu0 0
      %719 = vmatprep.subr.bf16.mxu0 0
      %720 = vmatpush1.bf16.msra.mxu0 %v641
      %721 = vmatprep.subr.bf16.mxu0 0
      %722 = vmatpush1.bf16.msra.mxu0 %v640
      %723 = vmatprep.subr.bf16.mxu0 0
      %724 = vmatpush1.bf16.msra.mxu0 %v639
      %725 = vmatprep.subr.bf16.mxu0 0
      %726 = vmatpush1.bf16.msra.mxu0 %v638
      %727 = vmatprep.subr.bf16.mxu0 0
      %728 = vmatpush1.bf16.msra.mxu0 %v637
      %729 = vmatprep.subr.bf16.mxu0 0
      %730 = vmatpush1.bf16.msra.mxu0 %v636
      %731 = vmatprep.subr.bf16.mxu0 0
      %732 = vmatpush2.bf16.msra.mxu0 0
      %733 = vmatprep.subr.bf16.mxu0 0
      %734 = vmatpush2.bf16.msra.mxu0 0
      %735 = vmatprep.subr.bf16.mxu0 0
      %736 = vmatpush2.bf16.msra.mxu0 0
      %737 = vmatprep.subr.bf16.mxu0 0
      %738 = vmatpush2.bf16.msra.mxu0 0
      %739 = vmatprep.subr.bf16.mxu0 0
      %740 = vmatpush2.bf16.msra.mxu0 0
      %741 = vmatprep.subr.bf16.mxu0 0
      %742 = vmatpush2.bf16.msra.mxu0 0
      %743 = vmatprep.subr.bf16.mxu0 0
      %744 = vmatpush2.bf16.msra.mxu0 0
      %745 = vmatprep.subr.bf16.mxu0 0
      %746 = vmatpush2.bf16.msra.mxu0 0
      %747 = vmatprep.mubr.bf16.mxu0 0
      %748 = vmatmul.mubr.bf16.gmra.mxu0 %v704
      %v749 = vpop.f32.mrf.mxu0
      %v750 = vadd.f32 %v645, %v749
      %v751 = vpop.f32.mrf.mxu0
      %v752 = vpop.f32.mrf.mxu0
      %v753 = vadd.f32 %v650, %v752
      %v754 = vpop.f32.mrf.mxu0
      %755 = vmatprep.mubr.bf16.mxu0 0
      %756 = vmatmul.mubr.bf16.gmra.mxu0 %v707
      %v757 = vpop.f32.mrf.mxu0
      %v758 = vadd.f32 %v655, %v757
      %v759 = vpop.f32.mrf.mxu0
      %v760 = vpop.f32.mrf.mxu0
      %v761 = vadd.f32 %v660, %v760
      %v762 = vpop.f32.mrf.mxu0
      %763 = vmatprep.mubr.bf16.mxu0 0
      %764 = vmatmul.mubr.bf16.gmra.mxu0 %v710
      %v765 = vpop.f32.mrf.mxu0
      %v766 = vadd.f32 %v665, %v765
      %v767 = vpop.f32.mrf.mxu0
      %v768 = vpop.f32.mrf.mxu0
      %v769 = vadd.f32 %v670, %v768
      %v770 = vpop.f32.mrf.mxu0
      %771 = vmatprep.mubr.bf16.mxu0 0
      %772 = vmatmul.mubr.bf16.gmra.mxu0 %v713
      %v773 = vpop.f32.mrf.mxu0
      %v774 = vadd.f32 %v675, %v773
      %v775 = vpop.f32.mrf.mxu0
      %v776 = vpop.f32.mrf.mxu0
      %v777 = vadd.f32 %v680, %v776
      %v778 = vpop.f32.mrf.mxu0
      %779 = vdwg.mxu0
      %v780 = vmul.f32 %v750, 0.5
      %v781 = vmul.f32 %v753, 0.5
      %v782 = vmul.f32 %v758, 0.5
      %v783 = vmul.f32 %v761, 0.5
      %v784 = vmul.f32 %v766, 0.5
      %v785 = vmul.f32 %v769, 0.5
      %v786 = vmul.f32 %v774, 0.5
      %v787 = vmul.f32 %v777, 0.5
      %v788 = vtanh.pop %v780
      %v789 = vtanh.pop %v781
      %v790 = vtanh.pop %v782
      %v791 = vtanh.pop %v783
      %v792 = vtanh.pop %v784
      %v793 = vtanh.pop %v785
      %v794 = vtanh.pop %v786
      %v795 = vtanh.pop %v787
      %v796 = vmul.f32 %v788, 0.5
      %v797 = vmul.f32 %v789, 0.5
      %v798 = vmul.f32 %v790, 0.5
      %v799 = vmul.f32 %v791, 0.5
      %v800 = vmul.f32 %v792, 0.5
      %v801 = vmul.f32 %v793, 0.5
      %v802 = vmul.f32 %v794, 0.5
      %v803 = vmul.f32 %v795, 0.5
      %v804 = vadd.f32 %v796, 0.5
      %v805 = vadd.f32 %v797, 0.5
      %v806 = vadd.f32 %v798, 0.5
      %v807 = vadd.f32 %v799, 0.5
      %v808 = vadd.f32 %v800, 0.5
      %v809 = vadd.f32 %v801, 0.5
      %v810 = vadd.f32 %v802, 0.5
      %v811 = vadd.f32 %v803, 0.5
      %813 = vset.pattern.permute.xlu0 0
      %814 = vperm.xlu0 %813, %v339
      %v815 = vpop.permute.xlu0 %814
      %818 = vset.pattern.permute.xlu0 0
      %819 = vperm.xlu0 %818, %v340
      %v820 = vpop.permute.xlu0 %819
      %823 = vset.pattern.permute.xlu0 0
      %824 = vperm.xlu0 %823, %v341
      %v825 = vpop.permute.xlu0 %824
      %828 = vset.pattern.permute.xlu0 0
      %829 = vperm.xlu0 %828, %v342
      %v830 = vpop.permute.xlu0 %829
      %833 = vset.pattern.permute.xlu0 0
      %834 = vperm.xlu0 %833, %v343
      %v835 = vpop.permute.xlu0 %834
      %838 = vset.pattern.permute.xlu0 0
      %839 = vperm.xlu0 %838, %v344
      %v840 = vpop.permute.xlu0 %839
      %843 = vset.pattern.permute.xlu0 0
      %844 = vperm.xlu0 %843, %v345
      %v845 = vpop.permute.xlu0 %844
      %848 = vset.pattern.permute.xlu0 0
      %849 = vperm.xlu0 %848, %v346
      %v850 = vpop.permute.xlu0 %849
      %v852 = vmul.f32 %v804, %v815
      %v853 = vmul.f32 %v805, %v820
      %v854 = vmul.f32 %v806, %v825
      %v855 = vmul.f32 %v807, %v830
      %v856 = vmul.f32 %v808, %v835
      %v857 = vmul.f32 %v809, %v840
      %v858 = vmul.f32 %v810, %v845
      %v859 = vmul.f32 %v811, %v850
      %v860 = vadd.f32 %v852, %v853
      %v861 = vadd.f32 %v860, %v854
      %v862 = vadd.f32 %v861, %v855
      %v863 = vadd.f32 %v862, %v856
      %v864 = vadd.f32 %v863, %v857
      %v865 = vadd.f32 %v864, %v858
      %v866 = vadd.f32 %v865, %v859
      %v867 = vrot.slane %v866, 4
      %v868 = vadd.f32 %v866, %v867
      %v869 = vrot.slane %v868, 2
      %v870 = vadd.f32 %v868, %v869
      %v871 = vrot.slane %v870, 1
      %v872 = vadd.f32 %v870, %v871
      %v873 = vstv %s347
      %v874 = vadd.f32 %v872, %v873
      %v875 = vmul.f32 %v874, 0.5
      %v876 = vtanh.pop %v875
      %v877 = vmul.f32 %v876, 0.5
      %v878 = vadd.f32 %v877, 0.5
      %879 = vst [vmem:[%s297] sm:$0x1] %v878
      %p880 = scmp.lt.s32.totalorder %s19, 1
      %s881 = scalar_select %p880, %s19, 1
      %s882 = scalar_lea.vmem %s7, %s881
      // Predicated region
      $region49: #{song_classifier_forward.1} parent=47 // pred_check
        %p883 = pneg %p189
      $region50: #{song_classifier_forward.1} parent=47 // pred_check_branch
        %885 = sbr.rel (%p883) target = $region52
      $region51: #{song_classifier_forward.1} parent=47 // pred_region
        _
      $region52: #{song_classifier_forward.1} parent=47 // pred_fallthru
        _
    $region48: #{song_classifier_forward.1} parent=5 // pred_fallthru
      _
    %p886 = scmp.le.s32.totalorder 2, %s14
    // Predicated region
    $region53: #{song_classifier_forward.1} parent=5 // pred_check
      %p887 = pneg %p886
    $region54: #{song_classifier_forward.1} parent=5 // pred_check_branch
      %889 = sbr.rel (%p887) target = $region56
    $region55: #{song_classifier_forward.1} parent=5 // pred_region
      %s890 = ssub.s32 %s14, 2
      // Predicated region
      $region57: #{song_classifier_forward.1} parent=55 // pred_check
        %p891 = pneg %p195
      $region58: #{song_classifier_forward.1} parent=55 // pred_check_branch
        %893 = sbr.rel (%p891) target = $region60
      $region59: #{song_classifier_forward.1} parent=55 // pred_region
        %p894 = scmp.lt.s32.totalorder %s20, 1
        %s895 = scalar_select %p894, %s20, 1
        %s896 = scalar_lea.vmem %s7, %s895
      $region60: #{song_classifier_forward.1} parent=55 // pred_fallthru
        _
    $region56: #{song_classifier_forward.1} parent=5 // pred_fallthru
      _
  $region6: #{song_classifier_forward.1} parent=0 // loop_footer
    %s18 = sadd.s32 1, %s14
  $region7: #{song_classifier_forward.1} parent=0 // loop_footer_branch
    %13 = sbr.rel target = $region3
  $region8: #{song_classifier_forward.1} parent=0 // loop_exit
    _

</llo_original>
